<compile_context>
chip_gen: v5e
topology: v5e:2x2
jax: 0.10.0
libtpu: 0.0.40
codegen_flags: <defaults>
</compile_context>

<pallas_src>
import jax
import jax.numpy as jnp
from jax.experimental import pallas as pl
from jax.experimental.pallas import tpu as pltpu

KSIZE = 7
PAD = 3


def build_conv_matrix(w, H, W):
    """Dense (H*W, H*W) matrix K with y_flat = x_flat @ K equal to a zero-padded
    7x7 cross-correlation (PyTorch Conv2d, bias=False) over the (H, W) map."""
    pi = jnp.arange(H)[:, None, None, None]   # input row
    pj = jnp.arange(W)[None, :, None, None]   # input col
    oi = jnp.arange(H)[None, None, :, None]   # output row
    oj = jnp.arange(W)[None, None, None, :]   # output col
    di = pi - oi + PAD
    dj = pj - oj + PAD
    valid = (di >= 0) & (di < KSIZE) & (dj >= 0) & (dj < KSIZE)
    vals = w[jnp.clip(di, 0, KSIZE - 1), jnp.clip(dj, 0, KSIZE - 1)]
    return jnp.where(valid, vals, 0.0).astype(jnp.float32).reshape(H * W, H * W)


def _make_kernel(C, tc, ragged_c, neg_fill):
    def kernel(x_ref, k_ref, o_ref, max_ref):
        # x_ref:   (nb, tc, HW)  VMEM  -- one channel tile of nb images, lane-dense
        # k_ref:   (HW, HW)      VMEM  -- conv matrix, constant across the grid
        # o_ref:   (nb, HW)      VMEM  -- output slab, resident across channel axis
        # max_ref: (nb, HW) f32  VMEM scratch -- running channel max
        c = pl.program_id(1)

        @pl.when(c == 0)
        def _():
            max_ref[...] = jnp.full_like(max_ref, -jnp.inf)

        x = x_ref[...]
        if ragged_c:
            # Mask channel rows beyond C (last tile reads out-of-bounds garbage).
            ch = c * tc + jax.lax.broadcasted_iota(jnp.int32, (1, tc, 1), 1)
            x = jnp.where(ch < C, x, neg_fill)

        # Channel max in the input's native dtype; upcast only the small result.
        tile_max = jnp.max(x, axis=1).astype(jnp.float32)          # (nb, HW)
        max_ref[...] = jnp.maximum(max_ref[...], tile_max)

        @pl.when(c == pl.num_programs(1) - 1)
        def _():
            # 7x7 conv as one MXU matmul: (nb, HW) @ (HW, HW), f32 accumulation.
            lhs = max_ref[...].astype(k_ref.dtype)
            y = jnp.dot(lhs, k_ref[...], preferred_element_type=jnp.float32)
            o_ref[...] = (jax.nn.sigmoid(y) * y).astype(o_ref.dtype)

    return kernel


def _vmem_capacity_bytes():
    try:
        return int(pltpu.get_tpu_info().vmem_capacity_bytes)
    except Exception:
        return 64 * 1024 * 1024   # conservative default (v7x per-TensorCore VMEM)


def _round_up(x, m):
    return ((x + m - 1) // m) * m


def _round_down(x, m):
    return max(m, (x // m) * m)


def _choose_tiles(N, C, HW, itemsize, k_bytes, vmem_budget, nb_max, tc_max, sub):
    # Batch block: as large as allowed; split into >=2 blocks (megacore) when N
    # is big enough to split on a packed-sublane boundary.
    if N <= nb_max:
        nb = _round_up(pl.cdiv(N, 2), sub) if N >= 4 * sub else N
    else:
        nb = _round_down(nb_max, sub)
    # Channel tile: full C when it fits, else a multiple of 8 (ragged last tile
    # is masked in-kernel).
    tc = C if C <= tc_max else _round_down(tc_max, 8)

    def vmem_bytes(nb_, tc_):
        return (2 * nb_ * tc_ * HW * itemsize     # double-buffered input tile
                + 2 * nb_ * HW * itemsize         # double-buffered output tile
                + nb_ * HW * 4                    # running-max scratch
                + k_bytes)                        # conv matrix

    while vmem_bytes(nb, tc) > vmem_budget:
        if tc > 8:
            tc = _round_down(tc // 2, 8)
        elif nb > sub:
            nb = _round_down(nb // 2, sub)
        else:
            break
    return nb, tc


def spatial_attention(x, w, *, nb_max=256, tc_max=256, mxu_bf16=False):
    """x: (N, C, H, W), w: (7, 7) -> (N, 1, H, W)."""
    N, C, H, W = x.shape
    HW = H * W
    dtype = x.dtype
    itemsize = jnp.dtype(dtype).itemsize
    sub = max(8, 32 // itemsize)            # packed-sublane alignment (8/16/32)

    k_dtype = jnp.bfloat16 if mxu_bf16 else jnp.float32
    K = build_conv_matrix(w.astype(jnp.float32), H, W).astype(k_dtype)
    k_bytes = HW * HW * jnp.dtype(k_dtype).itemsize
    # TODO(synk): for large feature maps (HW >~ 2K) the dense (HW, HW) conv
    # matrix exceeds VMEM (esp. v7x 64 MiB); switch to a block-banded K
    # (|dRow|,|dCol| <= 3) or 49 shifted-accumulate taps.

    vmem_cap = _vmem_capacity_bytes()
    vmem_budget = int(0.60 * vmem_cap)
    vmem_limit = min(int(0.85 * vmem_cap), 100 * 1024 * 1024)

    nb, tc = _choose_tiles(N, C, HW, itemsize, k_bytes, vmem_budget,
                           nb_max, tc_max, sub)

    grid = (pl.cdiv(N, nb), pl.cdiv(C, tc))
    ragged_c = (C % tc) != 0
    if jnp.issubdtype(dtype, jnp.floating):
        neg_fill = float("-inf")
    else:
        neg_fill = int(jnp.iinfo(dtype).min)

    kernel = _make_kernel(C, tc, ragged_c, neg_fill)
    x_flat = x.reshape(N, C, HW)

    def _run(single_buffer_k):
        if single_buffer_k:
            k_spec = pl.BlockSpec((HW, HW), lambda b, c: (0, 0),
                                  pipeline_mode=pl.Buffered(1))
        else:
            k_spec = pl.BlockSpec((HW, HW), lambda b, c: (0, 0))
        return pl.pallas_call(
            kernel,
            out_shape=jax.ShapeDtypeStruct((N, HW), dtype),
            grid_spec=pltpu.PrefetchScalarGridSpec(
                num_scalar_prefetch=0,
                grid=grid,
                in_specs=[
                    pl.BlockSpec((nb, tc, HW), lambda b, c: (b, c, 0)),
                    k_spec,
                ],
                out_specs=pl.BlockSpec((nb, HW), lambda b, c: (b, 0)),
                scratch_shapes=[pltpu.VMEM((nb, HW), jnp.float32)],
            ),
            compiler_params=pltpu.CompilerParams(
                dimension_semantics=("parallel", "arbitrary"),
                vmem_limit_bytes=vmem_limit,
            ),
        )(x_flat, K)

    out_flat = None
    if hasattr(pl, "Buffered"):
        try:
            out_flat = _run(True)
        except Exception:
            out_flat = None           # older JAX: pipeline_mode unsupported
    if out_flat is None:
        out_flat = _run(False)

    return out_flat.reshape(N, 1, H, W)


def reference(x, w):
    max_out = jnp.max(x, axis=1, keepdims=True)                    # (N,1,H,W)
    y = jax.lax.conv_general_dilated(
        max_out, w[None, None, :, :],
        window_strides=(1, 1), padding=((PAD, PAD), (PAD, PAD)),
        dimension_numbers=("NCHW", "OIHW", "NCHW"),
    )
    return jax.nn.sigmoid(y) * y


if __name__ == "__main__":
    key = jax.random.PRNGKey(0)
    kx, kw, kx2 = jax.random.split(key, 3)

    # Deterministic Conv2d(1, 1, 7, bias=False) weight init (PyTorch-style
    # kaiming-uniform bound = 1/sqrt(fan_in) = 1/7).
    bound = 1.0 / (KSIZE * KSIZE) ** 0.5
    w = jax.random.uniform(kw, (KSIZE, KSIZE), dtype=jnp.float32,
                           minval=-bound, maxval=bound)

    # Primary small case.
    N, C, H, W = 2, 4, 16, 16
    x = jax.random.normal(kx, (N, C, H, W), dtype=jnp.float32)
    out = jax.block_until_ready(spatial_attention(x, w))
    ref = reference(x, w)
    assert out.shape == (N, 1, H, W)
    assert jnp.allclose(out, ref, atol=1e-4, rtol=1e-4), "f32 mismatch vs reference"

    # Ragged batch blocks + ragged channel tiles (no wrapper-side padding;
    # in-kernel masking / Pallas masked writes handle the remainders).
    x2 = jax.random.normal(kx2, (10, 11, 16, 16), dtype=jnp.float32)
    out2 = jax.block_until_ready(spatial_attention(x2, w, nb_max=8, tc_max=8))
    ref2 = reference(x2, w)
    assert jnp.allclose(out2, ref2, atol=1e-4, rtol=1e-4), "ragged-tile mismatch"

    # bf16 conv-matrix path (f32 accumulation) for native MXU rate.
    out3 = jax.block_until_ready(spatial_attention(x, w, mxu_bf16=True))
    assert jnp.allclose(out3, ref, atol=2e-2, rtol=2e-2), "bf16-K mismatch"

    print("KERNEL_OK")
</pallas_src>

<mosaic_0001>
module attributes {stable_mosaic.version = 11 : i64} {
  func.func @kernel(%arg0: i32, %arg1: i32, %arg2: memref<2x4x256xf32, #tpu.memory_space<vmem>>, %arg3: memref<256x256xf32, #tpu.memory_space<vmem>>, %arg4: memref<2x256xf32, #tpu.memory_space<vmem>>, %arg5: memref<2x256xf32, #tpu.memory_space<vmem>>) attributes {dimension_semantics = [#tpu.dimension_semantics<parallel>, #tpu.dimension_semantics<arbitrary>], iteration_bounds = array<i64: 1, 1>, scalar_prefetch = 0 : i64, scratch_operands = 1 : i64, tpu.core_type = #tpu.core_type<tc>, window_params = [{transform_indices = @transform_0, window_bounds = array<i64: 2, 4, 256>}, {pipeline_mode = #tpu.pipeline_mode<synchronous>, transform_indices = @transform_1, window_bounds = array<i64: 256, 256>}, {transform_indices = @transform_2, window_bounds = array<i64: 2, 256>}]} {
    %c0_i32 = arith.constant 0 : i32
    %0 = arith.cmpi eq, %arg1, %c0_i32 : i32
    %1 = arith.extui %0 : i1 to i32
    %c0_i32_0 = arith.constant 0 : i32
    %2 = arith.cmpi ne, %1, %c0_i32_0 : i32
    scf.if %2 {
      %cst_9 = arith.constant 0xFF800000 : f32
      %11 = vector.broadcast %cst_9 : f32 to vector<2x256xf32>
      %c0_10 = arith.constant 0 : index
      %c0_11 = arith.constant 0 : index
      %12 = vector.load %arg5[%c0_10, %c0_11] : memref<2x256xf32, #tpu.memory_space<vmem>>, vector<2x256xf32>
      tpu.vector_store %arg5[%c0_10, %c0_11], %11 {strides = array<i32>} : memref<2x256xf32, #tpu.memory_space<vmem>>, vector<2x256xf32>,
    } else {
    }
    %c0 = arith.constant 0 : index
    %c0_1 = arith.constant 0 : index
    %c0_2 = arith.constant 0 : index
    %3 = vector.load %arg2[%c0, %c0_1, %c0_2] : memref<2x4x256xf32, #tpu.memory_space<vmem>>, vector<2x4x256xf32>
    %cst = arith.constant dense<0xFF800000> : vector<2x256xf32>
    %4 = vector.multi_reduction <maximumf>, %3, %cst [1] : vector<2x4x256xf32> to vector<2x256xf32>
    %c0_3 = arith.constant 0 : index
    %c0_4 = arith.constant 0 : index
    %5 = vector.load %arg5[%c0_3, %c0_4] : memref<2x256xf32, #tpu.memory_space<vmem>>, vector<2x256xf32>
    %6 = arith.maximumf %5, %4 : vector<2x256xf32>
    %c0_5 = arith.constant 0 : index
    %c0_6 = arith.constant 0 : index
    %7 = vector.load %arg5[%c0_5, %c0_6] : memref<2x256xf32, #tpu.memory_space<vmem>>, vector<2x256xf32>
    tpu.vector_store %arg5[%c0_5, %c0_6], %6 {strides = array<i32>} : memref<2x256xf32, #tpu.memory_space<vmem>>, vector<2x256xf32>,
    %c0_i32_7 = arith.constant 0 : i32
    %8 = arith.cmpi eq, %arg1, %c0_i32_7 : i32
    %9 = arith.extui %8 : i1 to i32
    %c0_i32_8 = arith.constant 0 : i32
    %10 = arith.cmpi ne, %9, %c0_i32_8 : i32
    scf.if %10 {
      %c0_9 = arith.constant 0 : index
      %c0_10 = arith.constant 0 : index
      %11 = vector.load %arg5[%c0_9, %c0_10] : memref<2x256xf32, #tpu.memory_space<vmem>>, vector<2x256xf32>
      %c0_11 = arith.constant 0 : index
      %c0_12 = arith.constant 0 : index
      %12 = vector.load %arg3[%c0_11, %c0_12] : memref<256x256xf32, #tpu.memory_space<vmem>>, vector<256x256xf32>
      %cst_13 = arith.constant dense<0.000000e+00> : vector<2x256xf32>
      %13 = tpu.matmul %11, %12, %cst_13 {dimension_numbers = #tpu.dot_dimension_numbers<[1], [0], [0], [1], [0, 0, 1, 1], [], []>} : vector<2x256xf32>, vector<256x256xf32>, vector<2x256xf32> -> vector<2x256xf32>
      %14 = arith.negf %13 : vector<2x256xf32>
      %15 = math.exp %14 : vector<2x256xf32>
      %cst_14 = arith.constant 1.000000e+00 : f32
      %16 = vector.broadcast %cst_14 : f32 to vector<2x256xf32>
      %17 = arith.addf %16, %15 : vector<2x256xf32>
      %18 = arith.divf %16, %17 : vector<2x256xf32>
      %19 = arith.mulf %18, %13 : vector<2x256xf32>
      %c0_15 = arith.constant 0 : index
      %c0_16 = arith.constant 0 : index
      %20 = vector.load %arg4[%c0_15, %c0_16] : memref<2x256xf32, #tpu.memory_space<vmem>>, vector<2x256xf32>
      tpu.vector_store %arg4[%c0_15, %c0_16], %19 {strides = array<i32>} : memref<2x256xf32, #tpu.memory_space<vmem>>, vector<2x256xf32>,
    } else {
    }
    return
  }
  func.func @transform_0(%arg0: i32, %arg1: i32) -> (i32, i32, i32) {
    %c0_i32 = arith.constant 0 : i32
    %c0_i32_0 = arith.constant 0 : i32
    return %arg0, %arg1, %c0_i32 : i32, i32, i32
  }
  func.func @transform_1(%arg0: i32, %arg1: i32) -> (i32, i32) {
    %c0_i32 = arith.constant 0 : i32
    %c0_i32_0 = arith.constant 0 : i32
    %c0_i32_1 = arith.constant 0 : i32
    return %c0_i32, %c0_i32_0 : i32, i32
  }
  func.func @transform_2(%arg0: i32, %arg1: i32) -> (i32, i32) {
    %c0_i32 = arith.constant 0 : i32
    %c0_i32_0 = arith.constant 0 : i32
    return %arg0, %c0_i32 : i32, i32
  }
}

module attributes {stable_mosaic.version = 11 : i64} {
  func.func @kernel(%arg0: i32, %arg1: i32, %arg2: memref<2x4x256xf32, #tpu.memory_space<vmem>>, %arg3: memref<256x256xf32, #tpu.memory_space<vmem>>, %arg4: memref<2x256xf32, #tpu.memory_space<vmem>>, %arg5: memref<2x256xf32, #tpu.memory_space<vmem>>) attributes {dimension_semantics = [#tpu.dimension_semantics<parallel>, #tpu.dimension_semantics<arbitrary>], iteration_bounds = array<i64: 1, 1>, scalar_prefetch = 0 : i64, scratch_operands = 1 : i64, tpu.core_type = #tpu.core_type<tc>, window_params = [{transform_indices = @transform_0, window_bounds = array<i64: 2, 4, 256>}, {pipeline_mode = #tpu.pipeline_mode<synchronous>, transform_indices = @transform_1, window_bounds = array<i64: 256, 256>}, {transform_indices = @transform_2, window_bounds = array<i64: 2, 256>}]} {
    %c0_i32 = arith.constant 0 : i32
    %0 = arith.cmpi eq, %arg1, %c0_i32 : i32
    %1 = arith.extui %0 : i1 to i32
    %c0_i32_0 = arith.constant 0 : i32
    %2 = arith.cmpi ne, %1, %c0_i32_0 : i32
    scf.if %2 {
      %cst_9 = arith.constant 0xFF800000 : f32
      %11 = vector.broadcast %cst_9 : f32 to vector<2x256xf32>
      %c0_10 = arith.constant 0 : index
      %c0_11 = arith.constant 0 : index
      %12 = vector.load %arg5[%c0_10, %c0_11] : memref<2x256xf32, #tpu.memory_space<vmem>>, vector<2x256xf32>
      tpu.vector_store %arg5[%c0_10, %c0_11], %11 {strides = array<i32>} : memref<2x256xf32, #tpu.memory_space<vmem>>, vector<2x256xf32>,
    } else {
    }
    %c0 = arith.constant 0 : index
    %c0_1 = arith.constant 0 : index
    %c0_2 = arith.constant 0 : index
    %3 = vector.load %arg2[%c0, %c0_1, %c0_2] : memref<2x4x256xf32, #tpu.memory_space<vmem>>, vector<2x4x256xf32>
    %cst = arith.constant dense<0xFF800000> : vector<2x256xf32>
    %4 = vector.multi_reduction <maximumf>, %3, %cst [1] : vector<2x4x256xf32> to vector<2x256xf32>
    %c0_3 = arith.constant 0 : index
    %c0_4 = arith.constant 0 : index
    %5 = vector.load %arg5[%c0_3, %c0_4] : memref<2x256xf32, #tpu.memory_space<vmem>>, vector<2x256xf32>
    %6 = arith.maximumf %5, %4 : vector<2x256xf32>
    %c0_5 = arith.constant 0 : index
    %c0_6 = arith.constant 0 : index
    %7 = vector.load %arg5[%c0_5, %c0_6] : memref<2x256xf32, #tpu.memory_space<vmem>>, vector<2x256xf32>
    tpu.vector_store %arg5[%c0_5, %c0_6], %6 {strides = array<i32>} : memref<2x256xf32, #tpu.memory_space<vmem>>, vector<2x256xf32>,
    %c0_i32_7 = arith.constant 0 : i32
    %8 = arith.cmpi eq, %arg1, %c0_i32_7 : i32
    %9 = arith.extui %8 : i1 to i32
    %c0_i32_8 = arith.constant 0 : i32
    %10 = arith.cmpi ne, %9, %c0_i32_8 : i32
    scf.if %10 {
      %c0_9 = arith.constant 0 : index
      %c0_10 = arith.constant 0 : index
      %11 = vector.load %arg5[%c0_9, %c0_10] : memref<2x256xf32, #tpu.memory_space<vmem>>, vector<2x256xf32>
      %c0_11 = arith.constant 0 : index
      %c0_12 = arith.constant 0 : index
      %12 = vector.load %arg3[%c0_11, %c0_12] : memref<256x256xf32, #tpu.memory_space<vmem>>, vector<256x256xf32>
      %cst_13 = arith.constant dense<0.000000e+00> : vector<2x256xf32>
      %13 = tpu.matmul %11, %12, %cst_13 {dimension_numbers = #tpu.dot_dimension_numbers<[1], [0], [0], [1], [0, 0, 1, 1], [], []>} : vector<2x256xf32>, vector<256x256xf32>, vector<2x256xf32> -> vector<2x256xf32>
      %14 = arith.negf %13 : vector<2x256xf32>
      %15 = math.exp %14 : vector<2x256xf32>
      %cst_14 = arith.constant 1.000000e+00 : f32
      %16 = vector.broadcast %cst_14 : f32 to vector<2x256xf32>
      %17 = arith.addf %16, %15 : vector<2x256xf32>
      %18 = arith.divf %16, %17 : vector<2x256xf32>
      %19 = arith.mulf %18, %13 : vector<2x256xf32>
      %c0_15 = arith.constant 0 : index
      %c0_16 = arith.constant 0 : index
      %20 = vector.load %arg4[%c0_15, %c0_16] : memref<2x256xf32, #tpu.memory_space<vmem>>, vector<2x256xf32>
      tpu.vector_store %arg4[%c0_15, %c0_16], %19 {strides = array<i32>} : memref<2x256xf32, #tpu.memory_space<vmem>>, vector<2x256xf32>,
    } else {
    }
    return
  }
  func.func @transform_0(%arg0: i32, %arg1: i32) -> (i32, i32, i32) {
    %c0_i32 = arith.constant 0 : i32
    %c0_i32_0 = arith.constant 0 : i32
    return %arg0, %arg1, %c0_i32 : i32, i32, i32
  }
  func.func @transform_1(%arg0: i32, %arg1: i32) -> (i32, i32) {
    %c0_i32 = arith.constant 0 : i32
    %c0_i32_0 = arith.constant 0 : i32
    %c0_i32_1 = arith.constant 0 : i32
    return %c0_i32, %c0_i32_0 : i32, i32
  }
  func.func @transform_2(%arg0: i32, %arg1: i32) -> (i32, i32) {
    %c0_i32 = arith.constant 0 : i32
    %c0_i32_0 = arith.constant 0 : i32
    return %arg0, %c0_i32 : i32, i32
  }
}

</mosaic_0001>

<llo_original>
// kernel: tpu_custom_call.1
$region0: #{tpu_custom_call.1}
  #allocation0 [shape = 'u32[]', space=smem, size = 0x4, offset = 0x4, fixed_abs, tag = 'smem constant byte address 0x4 - core index']
  #allocation1 [shape = 'u32[72,128]{1,0:T(1,128)}', space=vmem, size = 0x9000, scoped, tag = 'internal scratch']
  #allocation2 [shape = 'f32[2,256]{1,0:T(2,128)}', space=vmem, size = 0x800, scoped, tag = 'scratch operand']
  %s0 = inlined_call_operand.hbm [shape: f32[2,4,256], index: 0, kind: input, shape index: {}]
  %s1 = inlined_call_operand.hbm [shape: f32[256,256], index: 1, kind: input, shape index: {}]
  %s2 = inlined_call_operand.hbm [shape: f32[2,256], index: 2, kind: output, shape index: {}]
  %s3 = sld [smem:[#allocation0]]
  $region34: #{tpu_custom_call.1} parent=0
    _
  %s5 = ssub.s32 1, %s3
  %s6 = scalar_select 0, %s5, %s3
  $region1: #{tpu_custom_call.1} parent=0
    #allocation3 [shape = 'u8[8192]{0}', space=vmem, size = 0x2000, scoped, tag = 'input window, operand 0, single buffered']
    #allocation4 [shape = 's32[1]{0}', space=sflag, size = 0x4, scoped, tag = 'scoped memory for tpu_custom_call.1']
    #allocation5 [shape = 's32[1]{0}', space=sflag, size = 0x4, scoped, tag = 'scoped memory for tpu_custom_call.1']
    #allocation6 [shape = 'u8[262144]{0}', space=vmem, size = 0x40000, scoped, tag = 'input window, operand 1, single buffered']
    #allocation7 [shape = 's32[1]{0}', space=sflag, size = 0x4, scoped, tag = 'scoped memory for tpu_custom_call.1']
    #allocation8 [shape = 'u8[2048]{0}', space=vmem, size = 0x800, scoped, tag = 'output window, operand 0, single buffered']
    %7 = vsyncpa [#allocation4], 0
    %8 = vsyncpa [#allocation7], 0
    %9 = vsyncpa [#allocation5], 0
    // Predicated region
    $region2: #{tpu_custom_call.1} parent=1 // pred_check
      _
    $region3: #{tpu_custom_call.1} parent=1 // pred_check_branch
      %11 = sbr.rel (0) target = $region5
    $region4: #{tpu_custom_call.1} parent=1 // pred_region
      %13 = vsyncadd [#allocation4], 0
      %s14 = sshll.u32 %s0, 4
      %s15 = int_to_ptr.hbm [resolvable:$true] %s14
      %s16 = sshll.u32 [#allocation3], 4
      %s17 = int_to_ptr.vmem [resolvable:$true] %s16
      %22 = dma.hbm_to_vmem [thread:$0]  %s15, 256, %s17, [#allocation4], 128, 128, 8
    $region5: #{tpu_custom_call.1} parent=1 // pred_fallthru
      _
    // Predicated region
    $region6: #{tpu_custom_call.1} parent=1 // pred_check
      _
    $region7: #{tpu_custom_call.1} parent=1 // pred_check_branch
      %24 = sbr.rel (0) target = $region9
    $region8: #{tpu_custom_call.1} parent=1 // pred_region
      %26 = vsyncadd [#allocation7], 0
      %s27 = sshll.u32 %s1, 4
      %s28 = int_to_ptr.hbm [resolvable:$true] %s27
      %s29 = sshll.u32 [#allocation6], 4
      %s30 = int_to_ptr.vmem [resolvable:$true] %s29
      %35 = dma.hbm_to_vmem [thread:$0]  %s28, 8192, %s30, [#allocation7], 256, 256, 16
    $region9: #{tpu_custom_call.1} parent=1 // pred_fallthru
      _
    // Predicated region
    $region10: #{tpu_custom_call.1} parent=1 // pred_check
      _
    $region11: #{tpu_custom_call.1} parent=1 // pred_check_branch
      %37 = sbr.rel (0) target = $region13
    $region12: #{tpu_custom_call.1} parent=1 // pred_region
      %39 = dma.done [#allocation4], 256
    $region13: #{tpu_custom_call.1} parent=1 // pred_fallthru
      _
    // Predicated region
    $region14: #{tpu_custom_call.1} parent=1 // pred_check
      _
    $region15: #{tpu_custom_call.1} parent=1 // pred_check_branch
      %41 = sbr.rel (0) target = $region17
    $region16: #{tpu_custom_call.1} parent=1 // pred_region
      %43 = dma.done [#allocation7], 8192
    $region17: #{tpu_custom_call.1} parent=1 // pred_fallthru
      _
    %p44 = scmp.eq.s32.totalorder 0, 0
    // Predicated region
    $region18: #{tpu_custom_call.1} parent=1 // pred_check
      %p45 = pneg %p44
    $region19: #{tpu_custom_call.1} parent=1 // pred_check_branch
      %47 = sbr.rel (%p45) target = $region21
    $region20: #{tpu_custom_call.1} parent=1 // pred_region
      %48 = vst [vmem:[#allocation2] sm:$0xf] -inf
    $region21: #{tpu_custom_call.1} parent=1 // pred_fallthru
      _
    %v49 = vld [vmem:[#allocation3] sm:$0xff]
    %v50 = vld [vmem:[#allocation3 + $0x8] sm:$0xff]
    %53 = vst [vmem:[#allocation1] ss:$2 sm:$0xff] %v49
    %v54 = vld.sshfl [vmem:[#allocation1] sm:$0xff pattern:$0x75316420]
    %v55 = vld.sshfl [vmem:[#allocation1 + $0x8] sm:$0xff pattern:$0x75316420]
    %s56 = scalar_lea.vmem [#allocation1], 16
    %57 = vst [vmem:[%s56] ss:$2 sm:$0xff] %v50
    %v58 = vld.sshfl [vmem:[#allocation1 + $0x10] sm:$0xff pattern:$0x75316420]
    %v59 = vld.sshfl [vmem:[#allocation1 + $0x18] sm:$0xff pattern:$0x75316420]
    %vm64 = vcmask 1043456
    %v65 = vsel %vm64, %v54, -inf
    %v66 = vrot.slane %v65, 4
    %v67 = vmax.f32 %v65, %v66
    %v68 = vrot.slane %v67, 2
    %v69 = vmax.f32 %v67, %v68
    %v70 = vrot.slane %v69, 1
    %v71 = vmax.f32 %v69, %v70
    %v72 = vsel %vm64, %v55, -inf
    %v73 = vrot.slane %v72, 4
    %v74 = vmax.f32 %v72, %v73
    %v75 = vrot.slane %v74, 2
    %v76 = vmax.f32 %v74, %v75
    %v77 = vrot.slane %v76, 1
    %v78 = vmax.f32 %v76, %v77
    %v79 = vsel %vm64, %v58, -inf
    %v80 = vrot.slane %v79, 4
    %v81 = vmax.f32 %v79, %v80
    %v82 = vrot.slane %v81, 2
    %v83 = vmax.f32 %v81, %v82
    %v84 = vrot.slane %v83, 1
    %v85 = vmax.f32 %v83, %v84
    %v86 = vsel %vm64, %v59, -inf
    %v87 = vrot.slane %v86, 4
    %v88 = vmax.f32 %v86, %v87
    %v89 = vrot.slane %v88, 2
    %v90 = vmax.f32 %v88, %v89
    %v91 = vrot.slane %v90, 1
    %v92 = vmax.f32 %v90, %v91
    %v93 = vld [vmem:[#allocation2] sm:$0xf]
    %v98 = vrot.slane %v78, 6
    %v99 = vrot.slane %v92, 6
    %vm100 = vcmask 1041408
    %v101 = vsel %vm100, %v71, %v98
    %v102 = vsel %vm100, %v85, %v99
    %vm103 = vcmask 1044484
    %v104 = vsel %vm103, %v101, %v101
    %vm105 = vcmask 1046534
    %v106 = vsel %vm105, %v101, %v104
    %v107 = vrot.slane %v102, 7
    %vm108 = vcmask 1041409
    %v109 = vsel %vm108, %v107, %v106
    %vm110 = vcmask 1043459
    %v111 = vsel %vm110, %v107, %v109
    %vm112 = vcmask 1045509
    %v113 = vsel %vm112, %v107, %v111
    %vm114 = vcmask 1047559
    %v115 = vsel %vm114, %v107, %v113
    %v117 = vmax.f32 %v93, %v115
    %118 = vst [vmem:[#allocation2] sm:$0xf] %v117
    // Predicated region
    $region22: #{tpu_custom_call.1} parent=1 // pred_check
      %p119 = pneg %p44
    $region23: #{tpu_custom_call.1} parent=1 // pred_check_branch
      %121 = sbr.rel (%p119) target = $region25
    $region24: #{tpu_custom_call.1} parent=1 // pred_region
      %v122 = vld [vmem:[#allocation2] sm:$0xf]
      %v123 = vld [vmem:[#allocation6] sm:$0xff]
      %v124 = vld [vmem:[#allocation6 + $0x8] sm:$0xff]
      %v125 = vld [vmem:[#allocation6 + $0x10] sm:$0xff]
      %v126 = vld [vmem:[#allocation6 + $0x18] sm:$0xff]
      %v127 = vld [vmem:[#allocation6 + $0x20] sm:$0xff]
      %v128 = vld [vmem:[#allocation6 + $0x28] sm:$0xff]
      %v129 = vld [vmem:[#allocation6 + $0x30] sm:$0xff]
      %v130 = vld [vmem:[#allocation6 + $0x38] sm:$0xff]
      %v131 = vld [vmem:[#allocation6 + $0x40] sm:$0xff]
      %v132 = vld [vmem:[#allocation6 + $0x48] sm:$0xff]
      %v133 = vld [vmem:[#allocation6 + $0x50] sm:$0xff]
      %v134 = vld [vmem:[#allocation6 + $0x58] sm:$0xff]
      %v135 = vld [vmem:[#allocation6 + $0x60] sm:$0xff]
      %v136 = vld [vmem:[#allocation6 + $0x68] sm:$0xff]
      %v137 = vld [vmem:[#allocation6 + $0x70] sm:$0xff]
      %v138 = vld [vmem:[#allocation6 + $0x78] sm:$0xff]
      %v139 = vld [vmem:[#allocation6 + $0x80] sm:$0xff]
      %v140 = vld [vmem:[#allocation6 + $0x88] sm:$0xff]
      %v141 = vld [vmem:[#allocation6 + $0x90] sm:$0xff]
      %v142 = vld [vmem:[#allocation6 + $0x98] sm:$0xff]
      %v143 = vld [vmem:[#allocation6 + $0xa0] sm:$0xff]
      %v144 = vld [vmem:[#allocation6 + $0xa8] sm:$0xff]
      %v145 = vld [vmem:[#allocation6 + $0xb0] sm:$0xff]
      %v146 = vld [vmem:[#allocation6 + $0xb8] sm:$0xff]
      %v147 = vld [vmem:[#allocation6 + $0xc0] sm:$0xff]
      %v148 = vld [vmem:[#allocation6 + $0xc8] sm:$0xff]
      %v149 = vld [vmem:[#allocation6 + $0xd0] sm:$0xff]
      %v150 = vld [vmem:[#allocation6 + $0xd8] sm:$0xff]
      %v151 = vld [vmem:[#allocation6 + $0xe0] sm:$0xff]
      %v152 = vld [vmem:[#allocation6 + $0xe8] sm:$0xff]
      %v153 = vld [vmem:[#allocation6 + $0xf0] sm:$0xff]
      %v154 = vld [vmem:[#allocation6 + $0xf8] sm:$0xff]
      %v155 = vld [vmem:[#allocation6 + $0x100] sm:$0xff]
      %v156 = vld [vmem:[#allocation6 + $0x108] sm:$0xff]
      %v157 = vld [vmem:[#allocation6 + $0x110] sm:$0xff]
      %v158 = vld [vmem:[#allocation6 + $0x118] sm:$0xff]
      %v159 = vld [vmem:[#allocation6 + $0x120] sm:$0xff]
      %v160 = vld [vmem:[#allocation6 + $0x128] sm:$0xff]
      %v161 = vld [vmem:[#allocation6 + $0x130] sm:$0xff]
      %v162 = vld [vmem:[#allocation6 + $0x138] sm:$0xff]
      %v163 = vld [vmem:[#allocation6 + $0x140] sm:$0xff]
      %v164 = vld [vmem:[#allocation6 + $0x148] sm:$0xff]
      %v165 = vld [vmem:[#allocation6 + $0x150] sm:$0xff]
      %v166 = vld [vmem:[#allocation6 + $0x158] sm:$0xff]
      %v167 = vld [vmem:[#allocation6 + $0x160] sm:$0xff]
      %v168 = vld [vmem:[#allocation6 + $0x168] sm:$0xff]
      %v169 = vld [vmem:[#allocation6 + $0x170] sm:$0xff]
      %v170 = vld [vmem:[#allocation6 + $0x178] sm:$0xff]
      %v171 = vld [vmem:[#allocation6 + $0x180] sm:$0xff]
      %v172 = vld [vmem:[#allocation6 + $0x188] sm:$0xff]
      %v173 = vld [vmem:[#allocation6 + $0x190] sm:$0xff]
      %v174 = vld [vmem:[#allocation6 + $0x198] sm:$0xff]
      %v175 = vld [vmem:[#allocation6 + $0x1a0] sm:$0xff]
      %v176 = vld [vmem:[#allocation6 + $0x1a8] sm:$0xff]
      %v177 = vld [vmem:[#allocation6 + $0x1b0] sm:$0xff]
      %v178 = vld [vmem:[#allocation6 + $0x1b8] sm:$0xff]
      %v179 = vld [vmem:[#allocation6 + $0x1c0] sm:$0xff]
      %v180 = vld [vmem:[#allocation6 + $0x1c8] sm:$0xff]
      %v181 = vld [vmem:[#allocation6 + $0x1d0] sm:$0xff]
      %v182 = vld [vmem:[#allocation6 + $0x1d8] sm:$0xff]
      %v183 = vld [vmem:[#allocation6 + $0x1e0] sm:$0xff]
      %v184 = vld [vmem:[#allocation6 + $0x1e8] sm:$0xff]
      %v185 = vld [vmem:[#allocation6 + $0x1f0] sm:$0xff]
      %v186 = vld [vmem:[#allocation6 + $0x1f8] sm:$0xff]
      %188 = vst [vmem:[#allocation1] ss:$4 sm:$0xff] %v122
      %v189 = vld.sshfl [vmem:[#allocation1] sm:$0xff pattern:$0x73625140]
      %v190 = vld.sshfl [vmem:[#allocation1 + $0x8] sm:$0xff pattern:$0x73625140]
      %193 = vmatpush.msra.mxu0 %v153
      %194 = vmatpush.msra.mxu0 %v151
      %195 = vmatpush.msra.mxu0 %v149
      %196 = vmatpush.msra.mxu0 %v147
      %197 = vmatpush.msra.mxu0 %v145
      %198 = vmatpush.msra.mxu0 %v143
      %199 = vmatpush.msra.mxu0 %v141
      %200 = vmatpush.msra.mxu0 %v139
      %201 = vmatpush.msra.mxu0 %v137
      %202 = vmatpush.msra.mxu0 %v135
      %203 = vmatpush.msra.mxu0 %v133
      %204 = vmatpush.msra.mxu0 %v131
      %205 = vmatpush.msra.mxu0 %v129
      %206 = vmatpush.msra.mxu0 %v127
      %207 = vmatpush.msra.mxu0 %v125
      %208 = vmatpush.msra.mxu0 %v123
      %209 = vmatmul.f32.gmra.mxu0 %v189
      %v210 = vpop.f32.mrf.mxu0
      %v211 = vadd.f32 0.0, %v210
      %212 = vdwg.mxu0
      %213 = vmatpush.msra.mxu0 %v185
      %214 = vmatpush.msra.mxu0 %v183
      %215 = vmatpush.msra.mxu0 %v181
      %216 = vmatpush.msra.mxu0 %v179
      %217 = vmatpush.msra.mxu0 %v177
      %218 = vmatpush.msra.mxu0 %v175
      %219 = vmatpush.msra.mxu0 %v173
      %220 = vmatpush.msra.mxu0 %v171
      %221 = vmatpush.msra.mxu0 %v169
      %222 = vmatpush.msra.mxu0 %v167
      %223 = vmatpush.msra.mxu0 %v165
      %224 = vmatpush.msra.mxu0 %v163
      %225 = vmatpush.msra.mxu0 %v161
      %226 = vmatpush.msra.mxu0 %v159
      %227 = vmatpush.msra.mxu0 %v157
      %228 = vmatpush.msra.mxu0 %v155
      %229 = vmatmul.f32.gmra.mxu0 %v190
      %v230 = vpop.f32.mrf.mxu0
      %v231 = vadd.f32 %v211, %v230
      %232 = vdwg.mxu0
      %233 = vmatpush.msra.mxu0 %v154
      %234 = vmatpush.msra.mxu0 %v152
      %235 = vmatpush.msra.mxu0 %v150
      %236 = vmatpush.msra.mxu0 %v148
      %237 = vmatpush.msra.mxu0 %v146
      %238 = vmatpush.msra.mxu0 %v144
      %239 = vmatpush.msra.mxu0 %v142
      %240 = vmatpush.msra.mxu0 %v140
      %241 = vmatpush.msra.mxu0 %v138
      %242 = vmatpush.msra.mxu0 %v136
      %243 = vmatpush.msra.mxu0 %v134
      %244 = vmatpush.msra.mxu0 %v132
      %245 = vmatpush.msra.mxu0 %v130
      %246 = vmatpush.msra.mxu0 %v128
      %247 = vmatpush.msra.mxu0 %v126
      %248 = vmatpush.msra.mxu0 %v124
      %249 = vmatmul.f32.gmra.mxu0 %v189
      %v250 = vpop.f32.mrf.mxu0
      %v251 = vadd.f32 0.0, %v250
      %252 = vdwg.mxu0
      %253 = vmatpush.msra.mxu0 %v186
      %254 = vmatpush.msra.mxu0 %v184
      %255 = vmatpush.msra.mxu0 %v182
      %256 = vmatpush.msra.mxu0 %v180
      %257 = vmatpush.msra.mxu0 %v178
      %258 = vmatpush.msra.mxu0 %v176
      %259 = vmatpush.msra.mxu0 %v174
      %260 = vmatpush.msra.mxu0 %v172
      %261 = vmatpush.msra.mxu0 %v170
      %262 = vmatpush.msra.mxu0 %v168
      %263 = vmatpush.msra.mxu0 %v166
      %264 = vmatpush.msra.mxu0 %v164
      %265 = vmatpush.msra.mxu0 %v162
      %266 = vmatpush.msra.mxu0 %v160
      %267 = vmatpush.msra.mxu0 %v158
      %268 = vmatpush.msra.mxu0 %v156
      %269 = vmatmul.f32.gmra.mxu0 %v190
      %v270 = vpop.f32.mrf.mxu0
      %v271 = vadd.f32 %v251, %v270
      %272 = vdwg.mxu0
      %v273 = vxor.u32 %v231, 2147483648
      %v274 = vxor.u32 %v271, 2147483648
      %v275 = vmul.f32 %v273, 1.442695
      %v276 = vpow.pop %v275
      %v277 = vmul.f32 %v274, 1.442695
      %v278 = vpow.pop %v277
      %v279 = vadd.f32 %v276, 1.0
      %v280 = vadd.f32 %v278, 1.0
      %v281 = vrcp.pop %v279
      %v282 = vmul.f32 %v279, %v281
      %v283 = vsub.f32 1.0, %v282
      %v284 = vmul.f32 %v281, %v283
      %v285 = vadd.f32 %v281, %v284
      %vm286 = vweird.f32 %v279
      %vm287 = vweird.f32 %v281
      %vm288 = vmor %vm286, %vm287
      %v289 = vsel %vm288, %v281, %v285
      %v290 = vand.u32 2147483647, %v279
      %vm291 = vcmp.eq.f32.partialorder %v290, 8.507059e+37
      %v292 = vand.u32 %v279, 2147483648
      %v293 = vor.u32 1.1754944e-38, %v292
      %v294 = vsel %vm291, %v293, %v289
      %v295 = vmul.f32 1.0, %v294
      %v296 = vrcp.pop %v280
      %v297 = vmul.f32 %v280, %v296
      %v298 = vsub.f32 1.0, %v297
      %v299 = vmul.f32 %v296, %v298
      %v300 = vadd.f32 %v296, %v299
      %vm301 = vweird.f32 %v280
      %vm302 = vweird.f32 %v296
      %vm303 = vmor %vm301, %vm302
      %v304 = vsel %vm303, %v296, %v300
      %v305 = vand.u32 2147483647, %v280
      %vm306 = vcmp.eq.f32.partialorder %v305, 8.507059e+37
      %v307 = vand.u32 %v280, 2147483648
      %v308 = vor.u32 1.1754944e-38, %v307
      %v309 = vsel %vm306, %v308, %v304
      %v310 = vmul.f32 1.0, %v309
      %v311 = vmul.f32 %v295, %v231
      %v312 = vmul.f32 %v310, %v271
      %v315 = vrot.slane %v312, 6
      %v316 = vsel %vm100, %v311, %v315
      %318 = vst [vmem:[#allocation8] sm:$0xf] %v316
    $region25: #{tpu_custom_call.1} parent=1 // pred_fallthru
      _
    // Predicated region
    $region26: #{tpu_custom_call.1} parent=1 // pred_check
      _
    $region27: #{tpu_custom_call.1} parent=1 // pred_check_branch
      %320 = sbr.rel (0) target = $region29
    $region28: #{tpu_custom_call.1} parent=1 // pred_region
      %322 = vsyncadd [#allocation5], 0
      %s324 = sshll.u32 [#allocation8], 4
      %s325 = int_to_ptr.vmem [resolvable:$true] %s324
      %s326 = sshll.u32 %s2, 4
      %s327 = int_to_ptr.hbm [resolvable:$true] %s326
      %329 = dma.vmem_to_hbm [thread:$0]  %s325, 64, %s327, [#allocation5]
    $region29: #{tpu_custom_call.1} parent=1 // pred_fallthru
      _
    // Predicated region
    $region30: #{tpu_custom_call.1} parent=1 // pred_check
      _
    $region31: #{tpu_custom_call.1} parent=1 // pred_check_branch
      %331 = sbr.rel (0) target = $region33
    $region32: #{tpu_custom_call.1} parent=1 // pred_region
      %333 = dma.done [#allocation5], 64
    $region33: #{tpu_custom_call.1} parent=1 // pred_fallthru
      _
    %334 = vsyncpa [#allocation4], 1
    %335 = vsyncpa [#allocation7], 1
    %336 = vsyncpa [#allocation5], 1

// kernel: tpu_custom_call.1
$region0: #{tpu_custom_call.1}
  #allocation0 [shape = 'u32[]', space=smem, size = 0x4, offset = 0x4, fixed_abs, tag = 'smem constant byte address 0x4 - core index']
  #allocation1 [shape = 'u32[72,128]{1,0:T(1,128)}', space=vmem, size = 0x9000, scoped, tag = 'internal scratch']
  #allocation2 [shape = 'f32[2,256]{1,0:T(2,128)}', space=vmem, size = 0x800, scoped, tag = 'scratch operand']
  %s0 = inlined_call_operand.hbm [shape: f32[2,4,256], index: 0, kind: input, shape index: {}]
  %s1 = inlined_call_operand.hbm [shape: f32[256,256], index: 1, kind: input, shape index: {}]
  %s2 = inlined_call_operand.hbm [shape: f32[2,256], index: 2, kind: output, shape index: {}]
  %s3 = sld [smem:[#allocation0]]
  $region34: #{tpu_custom_call.1} parent=0
    _
  %s5 = ssub.s32 1, %s3
  %s6 = scalar_select 0, %s5, %s3
  $region1: #{tpu_custom_call.1} parent=0
    #allocation3 [shape = 'u8[8192]{0}', space=vmem, size = 0x2000, scoped, tag = 'input window, operand 0, single buffered']
    #allocation4 [shape = 's32[1]{0}', space=sflag, size = 0x4, scoped, tag = 'scoped memory for tpu_custom_call.1']
    #allocation5 [shape = 's32[1]{0}', space=sflag, size = 0x4, scoped, tag = 'scoped memory for tpu_custom_call.1']
    #allocation6 [shape = 'u8[262144]{0}', space=vmem, size = 0x40000, scoped, tag = 'input window, operand 1, single buffered']
    #allocation7 [shape = 's32[1]{0}', space=sflag, size = 0x4, scoped, tag = 'scoped memory for tpu_custom_call.1']
    #allocation8 [shape = 'u8[2048]{0}', space=vmem, size = 0x800, scoped, tag = 'output window, operand 0, single buffered']
    %7 = vsyncpa [#allocation4], 0
    %8 = vsyncpa [#allocation7], 0
    %9 = vsyncpa [#allocation5], 0
    // Predicated region
    $region2: #{tpu_custom_call.1} parent=1 // pred_check
      _
    $region3: #{tpu_custom_call.1} parent=1 // pred_check_branch
      %11 = sbr.rel (0) target = $region5
    $region4: #{tpu_custom_call.1} parent=1 // pred_region
      %13 = vsyncadd [#allocation4], 0
      %s14 = sshll.u32 %s0, 4
      %s15 = int_to_ptr.hbm [resolvable:$true] %s14
      %s16 = sshll.u32 [#allocation3], 4
      %s17 = int_to_ptr.vmem [resolvable:$true] %s16
      %22 = dma.hbm_to_vmem [thread:$0]  %s15, 256, %s17, [#allocation4], 128, 128, 8
    $region5: #{tpu_custom_call.1} parent=1 // pred_fallthru
      _
    // Predicated region
    $region6: #{tpu_custom_call.1} parent=1 // pred_check
      _
    $region7: #{tpu_custom_call.1} parent=1 // pred_check_branch
      %24 = sbr.rel (0) target = $region9
    $region8: #{tpu_custom_call.1} parent=1 // pred_region
      %26 = vsyncadd [#allocation7], 0
      %s27 = sshll.u32 %s1, 4
      %s28 = int_to_ptr.hbm [resolvable:$true] %s27
      %s29 = sshll.u32 [#allocation6], 4
      %s30 = int_to_ptr.vmem [resolvable:$true] %s29
      %35 = dma.hbm_to_vmem [thread:$0]  %s28, 8192, %s30, [#allocation7], 256, 256, 16
    $region9: #{tpu_custom_call.1} parent=1 // pred_fallthru
      _
    // Predicated region
    $region10: #{tpu_custom_call.1} parent=1 // pred_check
      _
    $region11: #{tpu_custom_call.1} parent=1 // pred_check_branch
      %37 = sbr.rel (0) target = $region13
    $region12: #{tpu_custom_call.1} parent=1 // pred_region
      %39 = dma.done [#allocation4], 256
    $region13: #{tpu_custom_call.1} parent=1 // pred_fallthru
      _
    // Predicated region
    $region14: #{tpu_custom_call.1} parent=1 // pred_check
      _
    $region15: #{tpu_custom_call.1} parent=1 // pred_check_branch
      %41 = sbr.rel (0) target = $region17
    $region16: #{tpu_custom_call.1} parent=1 // pred_region
      %43 = dma.done [#allocation7], 8192
    $region17: #{tpu_custom_call.1} parent=1 // pred_fallthru
      _
    %p44 = scmp.eq.s32.totalorder 0, 0
    // Predicated region
    $region18: #{tpu_custom_call.1} parent=1 // pred_check
      %p45 = pneg %p44
    $region19: #{tpu_custom_call.1} parent=1 // pred_check_branch
      %47 = sbr.rel (%p45) target = $region21
    $region20: #{tpu_custom_call.1} parent=1 // pred_region
      %48 = vst [vmem:[#allocation2] sm:$0xf] -inf
    $region21: #{tpu_custom_call.1} parent=1 // pred_fallthru
      _
    %v49 = vld [vmem:[#allocation3] sm:$0xff]
    %v50 = vld [vmem:[#allocation3 + $0x8] sm:$0xff]
    %53 = vst [vmem:[#allocation1] ss:$2 sm:$0xff] %v49
    %v54 = vld.sshfl [vmem:[#allocation1] sm:$0xff pattern:$0x75316420]
    %v55 = vld.sshfl [vmem:[#allocation1 + $0x8] sm:$0xff pattern:$0x75316420]
    %s56 = scalar_lea.vmem [#allocation1], 16
    %57 = vst [vmem:[%s56] ss:$2 sm:$0xff] %v50
    %v58 = vld.sshfl [vmem:[#allocation1 + $0x10] sm:$0xff pattern:$0x75316420]
    %v59 = vld.sshfl [vmem:[#allocation1 + $0x18] sm:$0xff pattern:$0x75316420]
    %vm64 = vcmask 1043456
    %v65 = vsel %vm64, %v54, -inf
    %v66 = vrot.slane %v65, 4
    %v67 = vmax.f32 %v65, %v66
    %v68 = vrot.slane %v67, 2
    %v69 = vmax.f32 %v67, %v68
    %v70 = vrot.slane %v69, 1
    %v71 = vmax.f32 %v69, %v70
    %v72 = vsel %vm64, %v55, -inf
    %v73 = vrot.slane %v72, 4
    %v74 = vmax.f32 %v72, %v73
    %v75 = vrot.slane %v74, 2
    %v76 = vmax.f32 %v74, %v75
    %v77 = vrot.slane %v76, 1
    %v78 = vmax.f32 %v76, %v77
    %v79 = vsel %vm64, %v58, -inf
    %v80 = vrot.slane %v79, 4
    %v81 = vmax.f32 %v79, %v80
    %v82 = vrot.slane %v81, 2
    %v83 = vmax.f32 %v81, %v82
    %v84 = vrot.slane %v83, 1
    %v85 = vmax.f32 %v83, %v84
    %v86 = vsel %vm64, %v59, -inf
    %v87 = vrot.slane %v86, 4
    %v88 = vmax.f32 %v86, %v87
    %v89 = vrot.slane %v88, 2
    %v90 = vmax.f32 %v88, %v89
    %v91 = vrot.slane %v90, 1
    %v92 = vmax.f32 %v90, %v91
    %v93 = vld [vmem:[#allocation2] sm:$0xf]
    %v98 = vrot.slane %v78, 6
    %v99 = vrot.slane %v92, 6
    %vm100 = vcmask 1041408
    %v101 = vsel %vm100, %v71, %v98
    %v102 = vsel %vm100, %v85, %v99
    %vm103 = vcmask 1044484
    %v104 = vsel %vm103, %v101, %v101
    %vm105 = vcmask 1046534
    %v106 = vsel %vm105, %v101, %v104
    %v107 = vrot.slane %v102, 7
    %vm108 = vcmask 1041409
    %v109 = vsel %vm108, %v107, %v106
    %vm110 = vcmask 1043459
    %v111 = vsel %vm110, %v107, %v109
    %vm112 = vcmask 1045509
    %v113 = vsel %vm112, %v107, %v111
    %vm114 = vcmask 1047559
    %v115 = vsel %vm114, %v107, %v113
    %v117 = vmax.f32 %v93, %v115
    %118 = vst [vmem:[#allocation2] sm:$0xf] %v117
    // Predicated region
    $region22: #{tpu_custom_call.1} parent=1 // pred_check
      %p119 = pneg %p44
    $region23: #{tpu_custom_call.1} parent=1 // pred_check_branch
      %121 = sbr.rel (%p119) target = $region25
    $region24: #{tpu_custom_call.1} parent=1 // pred_region
      %v122 = vld [vmem:[#allocation2] sm:$0xf]
      %v123 = vld [vmem:[#allocation6] sm:$0xff]
      %v124 = vld [vmem:[#allocation6 + $0x8] sm:$0xff]
      %v125 = vld [vmem:[#allocation6 + $0x10] sm:$0xff]
      %v126 = vld [vmem:[#allocation6 + $0x18] sm:$0xff]
      %v127 = vld [vmem:[#allocation6 + $0x20] sm:$0xff]
      %v128 = vld [vmem:[#allocation6 + $0x28] sm:$0xff]
      %v129 = vld [vmem:[#allocation6 + $0x30] sm:$0xff]
      %v130 = vld [vmem:[#allocation6 + $0x38] sm:$0xff]
      %v131 = vld [vmem:[#allocation6 + $0x40] sm:$0xff]
      %v132 = vld [vmem:[#allocation6 + $0x48] sm:$0xff]
      %v133 = vld [vmem:[#allocation6 + $0x50] sm:$0xff]
      %v134 = vld [vmem:[#allocation6 + $0x58] sm:$0xff]
      %v135 = vld [vmem:[#allocation6 + $0x60] sm:$0xff]
      %v136 = vld [vmem:[#allocation6 + $0x68] sm:$0xff]
      %v137 = vld [vmem:[#allocation6 + $0x70] sm:$0xff]
      %v138 = vld [vmem:[#allocation6 + $0x78] sm:$0xff]
      %v139 = vld [vmem:[#allocation6 + $0x80] sm:$0xff]
      %v140 = vld [vmem:[#allocation6 + $0x88] sm:$0xff]
      %v141 = vld [vmem:[#allocation6 + $0x90] sm:$0xff]
      %v142 = vld [vmem:[#allocation6 + $0x98] sm:$0xff]
      %v143 = vld [vmem:[#allocation6 + $0xa0] sm:$0xff]
      %v144 = vld [vmem:[#allocation6 + $0xa8] sm:$0xff]
      %v145 = vld [vmem:[#allocation6 + $0xb0] sm:$0xff]
      %v146 = vld [vmem:[#allocation6 + $0xb8] sm:$0xff]
      %v147 = vld [vmem:[#allocation6 + $0xc0] sm:$0xff]
      %v148 = vld [vmem:[#allocation6 + $0xc8] sm:$0xff]
      %v149 = vld [vmem:[#allocation6 + $0xd0] sm:$0xff]
      %v150 = vld [vmem:[#allocation6 + $0xd8] sm:$0xff]
      %v151 = vld [vmem:[#allocation6 + $0xe0] sm:$0xff]
      %v152 = vld [vmem:[#allocation6 + $0xe8] sm:$0xff]
      %v153 = vld [vmem:[#allocation6 + $0xf0] sm:$0xff]
      %v154 = vld [vmem:[#allocation6 + $0xf8] sm:$0xff]
      %v155 = vld [vmem:[#allocation6 + $0x100] sm:$0xff]
      %v156 = vld [vmem:[#allocation6 + $0x108] sm:$0xff]
      %v157 = vld [vmem:[#allocation6 + $0x110] sm:$0xff]
      %v158 = vld [vmem:[#allocation6 + $0x118] sm:$0xff]
      %v159 = vld [vmem:[#allocation6 + $0x120] sm:$0xff]
      %v160 = vld [vmem:[#allocation6 + $0x128] sm:$0xff]
      %v161 = vld [vmem:[#allocation6 + $0x130] sm:$0xff]
      %v162 = vld [vmem:[#allocation6 + $0x138] sm:$0xff]
      %v163 = vld [vmem:[#allocation6 + $0x140] sm:$0xff]
      %v164 = vld [vmem:[#allocation6 + $0x148] sm:$0xff]
      %v165 = vld [vmem:[#allocation6 + $0x150] sm:$0xff]
      %v166 = vld [vmem:[#allocation6 + $0x158] sm:$0xff]
      %v167 = vld [vmem:[#allocation6 + $0x160] sm:$0xff]
      %v168 = vld [vmem:[#allocation6 + $0x168] sm:$0xff]
      %v169 = vld [vmem:[#allocation6 + $0x170] sm:$0xff]
      %v170 = vld [vmem:[#allocation6 + $0x178] sm:$0xff]
      %v171 = vld [vmem:[#allocation6 + $0x180] sm:$0xff]
      %v172 = vld [vmem:[#allocation6 + $0x188] sm:$0xff]
      %v173 = vld [vmem:[#allocation6 + $0x190] sm:$0xff]
      %v174 = vld [vmem:[#allocation6 + $0x198] sm:$0xff]
      %v175 = vld [vmem:[#allocation6 + $0x1a0] sm:$0xff]
      %v176 = vld [vmem:[#allocation6 + $0x1a8] sm:$0xff]
      %v177 = vld [vmem:[#allocation6 + $0x1b0] sm:$0xff]
      %v178 = vld [vmem:[#allocation6 + $0x1b8] sm:$0xff]
      %v179 = vld [vmem:[#allocation6 + $0x1c0] sm:$0xff]
      %v180 = vld [vmem:[#allocation6 + $0x1c8] sm:$0xff]
      %v181 = vld [vmem:[#allocation6 + $0x1d0] sm:$0xff]
      %v182 = vld [vmem:[#allocation6 + $0x1d8] sm:$0xff]
      %v183 = vld [vmem:[#allocation6 + $0x1e0] sm:$0xff]
      %v184 = vld [vmem:[#allocation6 + $0x1e8] sm:$0xff]
      %v185 = vld [vmem:[#allocation6 + $0x1f0] sm:$0xff]
      %v186 = vld [vmem:[#allocation6 + $0x1f8] sm:$0xff]
      %188 = vst [vmem:[#allocation1] ss:$4 sm:$0xff] %v122
      %v189 = vld.sshfl [vmem:[#allocation1] sm:$0xff pattern:$0x73625140]
      %v190 = vld.sshfl [vmem:[#allocation1 + $0x8] sm:$0xff pattern:$0x73625140]
      %193 = vmatpush.msra.mxu0 %v153
      %194 = vmatpush.msra.mxu0 %v151
      %195 = vmatpush.msra.mxu0 %v149
      %196 = vmatpush.msra.mxu0 %v147
      %197 = vmatpush.msra.mxu0 %v145
      %198 = vmatpush.msra.mxu0 %v143
      %199 = vmatpush.msra.mxu0 %v141
      %200 = vmatpush.msra.mxu0 %v139
      %201 = vmatpush.msra.mxu0 %v137
      %202 = vmatpush.msra.mxu0 %v135
      %203 = vmatpush.msra.mxu0 %v133
      %204 = vmatpush.msra.mxu0 %v131
      %205 = vmatpush.msra.mxu0 %v129
      %206 = vmatpush.msra.mxu0 %v127
      %207 = vmatpush.msra.mxu0 %v125
      %208 = vmatpush.msra.mxu0 %v123
      %209 = vmatmul.f32.gmra.mxu0 %v189
      %v210 = vpop.f32.mrf.mxu0
      %v211 = vadd.f32 0.0, %v210
      %212 = vdwg.mxu0
      %213 = vmatpush.msra.mxu0 %v185
      %214 = vmatpush.msra.mxu0 %v183
      %215 = vmatpush.msra.mxu0 %v181
      %216 = vmatpush.msra.mxu0 %v179
      %217 = vmatpush.msra.mxu0 %v177
      %218 = vmatpush.msra.mxu0 %v175
      %219 = vmatpush.msra.mxu0 %v173
      %220 = vmatpush.msra.mxu0 %v171
      %221 = vmatpush.msra.mxu0 %v169
      %222 = vmatpush.msra.mxu0 %v167
      %223 = vmatpush.msra.mxu0 %v165
      %224 = vmatpush.msra.mxu0 %v163
      %225 = vmatpush.msra.mxu0 %v161
      %226 = vmatpush.msra.mxu0 %v159
      %227 = vmatpush.msra.mxu0 %v157
      %228 = vmatpush.msra.mxu0 %v155
      %229 = vmatmul.f32.gmra.mxu0 %v190
      %v230 = vpop.f32.mrf.mxu0
      %v231 = vadd.f32 %v211, %v230
      %232 = vdwg.mxu0
      %233 = vmatpush.msra.mxu0 %v154
      %234 = vmatpush.msra.mxu0 %v152
      %235 = vmatpush.msra.mxu0 %v150
      %236 = vmatpush.msra.mxu0 %v148
      %237 = vmatpush.msra.mxu0 %v146
      %238 = vmatpush.msra.mxu0 %v144
      %239 = vmatpush.msra.mxu0 %v142
      %240 = vmatpush.msra.mxu0 %v140
      %241 = vmatpush.msra.mxu0 %v138
      %242 = vmatpush.msra.mxu0 %v136
      %243 = vmatpush.msra.mxu0 %v134
      %244 = vmatpush.msra.mxu0 %v132
      %245 = vmatpush.msra.mxu0 %v130
      %246 = vmatpush.msra.mxu0 %v128
      %247 = vmatpush.msra.mxu0 %v126
      %248 = vmatpush.msra.mxu0 %v124
      %249 = vmatmul.f32.gmra.mxu0 %v189
      %v250 = vpop.f32.mrf.mxu0
      %v251 = vadd.f32 0.0, %v250
      %252 = vdwg.mxu0
      %253 = vmatpush.msra.mxu0 %v186
      %254 = vmatpush.msra.mxu0 %v184
      %255 = vmatpush.msra.mxu0 %v182
      %256 = vmatpush.msra.mxu0 %v180
      %257 = vmatpush.msra.mxu0 %v178
      %258 = vmatpush.msra.mxu0 %v176
      %259 = vmatpush.msra.mxu0 %v174
      %260 = vmatpush.msra.mxu0 %v172
      %261 = vmatpush.msra.mxu0 %v170
      %262 = vmatpush.msra.mxu0 %v168
      %263 = vmatpush.msra.mxu0 %v166
      %264 = vmatpush.msra.mxu0 %v164
      %265 = vmatpush.msra.mxu0 %v162
      %266 = vmatpush.msra.mxu0 %v160
      %267 = vmatpush.msra.mxu0 %v158
      %268 = vmatpush.msra.mxu0 %v156
      %269 = vmatmul.f32.gmra.mxu0 %v190
      %v270 = vpop.f32.mrf.mxu0
      %v271 = vadd.f32 %v251, %v270
      %272 = vdwg.mxu0
      %v273 = vxor.u32 %v231, 2147483648
      %v274 = vxor.u32 %v271, 2147483648
      %v275 = vmul.f32 %v273, 1.442695
      %v276 = vpow.pop %v275
      %v277 = vmul.f32 %v274, 1.442695
      %v278 = vpow.pop %v277
      %v279 = vadd.f32 %v276, 1.0
      %v280 = vadd.f32 %v278, 1.0
      %v281 = vrcp.pop %v279
      %v282 = vmul.f32 %v279, %v281
      %v283 = vsub.f32 1.0, %v282
      %v284 = vmul.f32 %v281, %v283
      %v285 = vadd.f32 %v281, %v284
      %vm286 = vweird.f32 %v279
      %vm287 = vweird.f32 %v281
      %vm288 = vmor %vm286, %vm287
      %v289 = vsel %vm288, %v281, %v285
      %v290 = vand.u32 2147483647, %v279
      %vm291 = vcmp.eq.f32.partialorder %v290, 8.507059e+37
      %v292 = vand.u32 %v279, 2147483648
      %v293 = vor.u32 1.1754944e-38, %v292
      %v294 = vsel %vm291, %v293, %v289
      %v295 = vmul.f32 1.0, %v294
      %v296 = vrcp.pop %v280
      %v297 = vmul.f32 %v280, %v296
      %v298 = vsub.f32 1.0, %v297
      %v299 = vmul.f32 %v296, %v298
      %v300 = vadd.f32 %v296, %v299
      %vm301 = vweird.f32 %v280
      %vm302 = vweird.f32 %v296
      %vm303 = vmor %vm301, %vm302
      %v304 = vsel %vm303, %v296, %v300
      %v305 = vand.u32 2147483647, %v280
      %vm306 = vcmp.eq.f32.partialorder %v305, 8.507059e+37
      %v307 = vand.u32 %v280, 2147483648
      %v308 = vor.u32 1.1754944e-38, %v307
      %v309 = vsel %vm306, %v308, %v304
      %v310 = vmul.f32 1.0, %v309
      %v311 = vmul.f32 %v295, %v231
      %v312 = vmul.f32 %v310, %v271
      %v315 = vrot.slane %v312, 6
      %v316 = vsel %vm100, %v311, %v315
      %318 = vst [vmem:[#allocation8] sm:$0xf] %v316
    $region25: #{tpu_custom_call.1} parent=1 // pred_fallthru
      _
    // Predicated region
    $region26: #{tpu_custom_call.1} parent=1 // pred_check
      _
    $region27: #{tpu_custom_call.1} parent=1 // pred_check_branch
      %320 = sbr.rel (0) target = $region29
    $region28: #{tpu_custom_call.1} parent=1 // pred_region
      %322 = vsyncadd [#allocation5], 0
      %s324 = sshll.u32 [#allocation8], 4
      %s325 = int_to_ptr.vmem [resolvable:$true] %s324
      %s326 = sshll.u32 %s2, 4
      %s327 = int_to_ptr.hbm [resolvable:$true] %s326
      %329 = dma.vmem_to_hbm [thread:$0]  %s325, 64, %s327, [#allocation5]
    $region29: #{tpu_custom_call.1} parent=1 // pred_fallthru
      _
    // Predicated region
    $region30: #{tpu_custom_call.1} parent=1 // pred_check
      _
    $region31: #{tpu_custom_call.1} parent=1 // pred_check_branch
      %331 = sbr.rel (0) target = $region33
    $region32: #{tpu_custom_call.1} parent=1 // pred_region
      %333 = dma.done [#allocation5], 64
    $region33: #{tpu_custom_call.1} parent=1 // pred_fallthru
      _
    %334 = vsyncpa [#allocation4], 1
    %335 = vsyncpa [#allocation7], 1
    %336 = vsyncpa [#allocation5], 1

</llo_original>
